<compile_context>
chip_gen: v5e
topology: v5e:2x2
jax: 0.10.0
libtpu: 0.0.40
codegen_flags: <defaults>
</compile_context>

<pallas_src>
import jax
import jax.numpy as jnp
from jax.experimental import pallas as pl
from jax.experimental.pallas import tpu as pltpu

EPS = 1e-5


def adain_kernel(gamma_ref, beta_ref, x_ref, o_ref):
    """One row tile; each row is an independent (n, c) instance-norm group.

    gamma_ref, beta_ref : (TR, 1)   per-row style modulation
    x_ref, o_ref        : (TR, HW)  spatial dim on the lane axis
    """
    xb = x_ref[...].astype(jnp.float32)                        # (TR, HW)
    inv_hw = 1.0 / xb.shape[1]

    # One-pass stats: E[x] and E[x^2].  Clamped E[x^2] - mean^2 matches the
    # biased variance; fine for typical pre-norm activations (switch back to
    # the subtract-mean form if inputs can carry huge DC offsets).
    mean = jnp.sum(xb, axis=1, keepdims=True) * inv_hw         # (TR, 1)
    ex2 = jnp.sum(xb * xb, axis=1, keepdims=True) * inv_hw     # (TR, 1)
    var = jnp.maximum(ex2 - mean * mean, 0.0)

    # Fused affine: out = scale * x + bias  (single elementwise sweep).
    scale = (1.0 + gamma_ref[...]) * jax.lax.rsqrt(var + EPS)  # (TR, 1)
    bias = beta_ref[...] - scale * mean                        # (TR, 1)
    o_ref[...] = (xb * scale + bias).astype(o_ref.dtype)


def _row_tile(num_rows, hw, itemsize, budget_bytes=8 * 1024 * 1024):
    """Pick row tile TR so double-buffered in+out (~4*TR*HW*itemsize) fits budget."""
    tr = budget_bytes // (4 * hw * itemsize)
    if tr >= num_rows:
        return num_rows, num_rows              # single full-height tile, no padding
    tr = max(8, (tr // 8) * 8)                 # keep sublanes full (multiple of 8)
    # TODO(synk): for extreme H*W where even TR=8 overflows scoped VMEM, tile HW
    # with a two-phase (stats pass + apply pass) reduction instead.
    padded = ((num_rows + tr - 1) // tr) * tr
    return tr, padded


def adain(x, s, fc_weight, fc_bias):
    """x: (N, C, H, W), s: (N, style_dim), fc_weight: (2C, style_dim), fc_bias: (2C,)."""
    N, C, H, W = x.shape
    HW = H * W
    NC = N * C

    # Style FC hoisted out of the kernel: one tiny XLA GEMM, negligible vs the
    # HBM stream of x.
    h = (s.astype(jnp.float32) @ fc_weight.astype(jnp.float32).T
         + fc_bias.astype(jnp.float32))                        # (N, 2C)
    gamma = h[:, :C].reshape(NC, 1)
    beta = h[:, C:].reshape(NC, 1)

    # Fold (N, C) into rows; HW stays contiguous on the lane axis.
    # (HW that is a multiple of 128 keeps stores lane-dense; other sizes still
    # work, just with masked stores.)
    x2 = x.reshape(NC, HW)

    TR, NC_pad = _row_tile(NC, HW, jnp.dtype(x.dtype).itemsize)
    if NC_pad != NC:
        pad = NC_pad - NC
        x2 = jnp.pad(x2, ((0, pad), (0, 0)))
        gamma = jnp.pad(gamma, ((0, pad), (0, 0)))
        beta = jnp.pad(beta, ((0, pad), (0, 0)))

    out = pl.pallas_call(
        adain_kernel,
        out_shape=jax.ShapeDtypeStruct((NC_pad, HW), x.dtype),
        grid_spec=pltpu.PrefetchScalarGridSpec(
            num_scalar_prefetch=0,
            grid=(NC_pad // TR,),
            in_specs=[
                pl.BlockSpec((TR, 1), lambda r: (r, 0)),       # gamma rows
                pl.BlockSpec((TR, 1), lambda r: (r, 0)),       # beta rows
                pl.BlockSpec((TR, HW), lambda r: (r, 0)),      # x rows
            ],
            out_specs=pl.BlockSpec((TR, HW), lambda r: (r, 0)),
        ),
        # All row tiles are independent -> parallel (v7x: shard across both TCs).
        compiler_params=pltpu.CompilerParams(
            dimension_semantics=("parallel",)),
    )(gamma, beta, x2)

    if NC_pad != NC:
        out = out[:NC]
    return out.reshape(N, C, H, W)


def adain_reference(x, s, fc_weight, fc_bias):
    """Pure-JAX reference matching the PyTorch module."""
    N, C, H, W = x.shape
    h = s @ fc_weight.T + fc_bias                  # (N, 2C)
    gamma = h[:, :C].reshape(N, C, 1, 1)
    beta = h[:, C:].reshape(N, C, 1, 1)
    mean = jnp.mean(x, axis=(2, 3), keepdims=True)
    var = jnp.mean((x - mean) ** 2, axis=(2, 3), keepdims=True)
    xn = (x - mean) * jax.lax.rsqrt(var + EPS)
    return (1.0 + gamma) * xn + beta


if __name__ == "__main__":
    # Small shapes consistent with AdaIN(style_dim=8, num_features=4)
    N, C, H, W = 2, 4, 16, 16
    STYLE_DIM = 8

    key = jax.random.PRNGKey(0)
    kx, ks, kw, kb = jax.random.split(key, 4)

    x = jax.random.normal(kx, (N, C, H, W), dtype=jnp.float32)
    s = jax.random.normal(ks, (N, STYLE_DIM), dtype=jnp.float32)

    # Deterministic parameter init (PyTorch Linear default: U(-1/sqrt(in), 1/sqrt(in)))
    bound = 1.0 / (STYLE_DIM ** 0.5)
    fc_weight = jax.random.uniform(kw, (2 * C, STYLE_DIM), jnp.float32, -bound, bound)
    fc_bias = jax.random.uniform(kb, (2 * C,), jnp.float32, -bound, bound)

    out = adain(x, s, fc_weight, fc_bias)
    out = jax.block_until_ready(out)

    ref = adain_reference(x, s, fc_weight, fc_bias)
    assert out.shape == (N, C, H, W)
    assert jnp.allclose(out, ref, atol=1e-4, rtol=1e-4)

    print("KERNEL_OK")
</pallas_src>

<mosaic_0001>
module attributes {stable_mosaic.version = 11 : i64} {
  func.func @adain_kernel(%arg0: i32, %arg1: memref<8x1xf32, #tpu.memory_space<vmem>>, %arg2: memref<8x1xf32, #tpu.memory_space<vmem>>, %arg3: memref<8x256xf32, #tpu.memory_space<vmem>>, %arg4: memref<8x256xf32, #tpu.memory_space<vmem>>) attributes {dimension_semantics = [#tpu.dimension_semantics<parallel>], iteration_bounds = array<i64: 1>, scalar_prefetch = 0 : i64, scratch_operands = 0 : i64, tpu.core_type = #tpu.core_type<tc>, window_params = [{transform_indices = @transform_0, window_bounds = array<i64: 8, 1>}, {transform_indices = @transform_1, window_bounds = array<i64: 8, 1>}, {transform_indices = @transform_2, window_bounds = array<i64: 8, 256>}, {transform_indices = @transform_3, window_bounds = array<i64: 8, 256>}]} {
    %c0 = arith.constant 0 : index
    %c0_0 = arith.constant 0 : index
    %0 = vector.load %arg3[%c0, %c0_0] : memref<8x256xf32, #tpu.memory_space<vmem>>, vector<8x256xf32>
    %cst = arith.constant dense<0.000000e+00> : vector<8xf32>
    %1 = vector.multi_reduction <add>, %0, %cst [1] : vector<8x256xf32> to vector<8xf32>
    %2 = vector.shape_cast %1 : vector<8xf32> to vector<8x1xf32>
    %cst_1 = arith.constant 3.906250e-03 : f32
    %3 = vector.broadcast %cst_1 : f32 to vector<8x1xf32>
    %4 = arith.mulf %2, %3 : vector<8x1xf32>
    %5 = arith.mulf %0, %0 : vector<8x256xf32>
    %cst_2 = arith.constant dense<0.000000e+00> : vector<8xf32>
    %6 = vector.multi_reduction <add>, %5, %cst_2 [1] : vector<8x256xf32> to vector<8xf32>
    %7 = vector.shape_cast %6 : vector<8xf32> to vector<8x1xf32>
    %cst_3 = arith.constant 3.906250e-03 : f32
    %8 = vector.broadcast %cst_3 : f32 to vector<8x1xf32>
    %9 = arith.mulf %7, %8 : vector<8x1xf32>
    %10 = arith.mulf %4, %4 : vector<8x1xf32>
    %11 = arith.subf %9, %10 : vector<8x1xf32>
    %cst_4 = arith.constant 0.000000e+00 : f32
    %12 = vector.broadcast %cst_4 : f32 to vector<8x1xf32>
    %13 = arith.maximumf %11, %12 : vector<8x1xf32>
    %c0_5 = arith.constant 0 : index
    %c0_6 = arith.constant 0 : index
    %14 = vector.load %arg1[%c0_5, %c0_6] : memref<8x1xf32, #tpu.memory_space<vmem>>, vector<8x1xf32>
    %cst_7 = arith.constant 1.000000e+00 : f32
    %15 = vector.broadcast %cst_7 : f32 to vector<8x1xf32>
    %16 = arith.addf %15, %14 : vector<8x1xf32>
    %cst_8 = arith.constant 9.99999974E-6 : f32
    %17 = vector.broadcast %cst_8 : f32 to vector<8x1xf32>
    %18 = arith.addf %13, %17 : vector<8x1xf32>
    %19 = math.rsqrt %18 : vector<8x1xf32>
    %20 = arith.mulf %16, %19 : vector<8x1xf32>
    %c0_9 = arith.constant 0 : index
    %c0_10 = arith.constant 0 : index
    %21 = vector.load %arg2[%c0_9, %c0_10] : memref<8x1xf32, #tpu.memory_space<vmem>>, vector<8x1xf32>
    %22 = arith.mulf %20, %4 : vector<8x1xf32>
    %23 = arith.subf %21, %22 : vector<8x1xf32>
    %24 = vector.broadcast %20 : vector<8x1xf32> to vector<8x256xf32>
    %25 = arith.mulf %0, %24 : vector<8x256xf32>
    %26 = vector.broadcast %23 : vector<8x1xf32> to vector<8x256xf32>
    %27 = arith.addf %25, %26 : vector<8x256xf32>
    %c0_11 = arith.constant 0 : index
    %c0_12 = arith.constant 0 : index
    %28 = vector.load %arg4[%c0_11, %c0_12] : memref<8x256xf32, #tpu.memory_space<vmem>>, vector<8x256xf32>
    tpu.vector_store %arg4[%c0_11, %c0_12], %27 {strides = array<i32>} : memref<8x256xf32, #tpu.memory_space<vmem>>, vector<8x256xf32>,
    return
  }
  func.func @transform_0(%arg0: i32) -> (i32, i32) {
    %c0_i32 = arith.constant 0 : i32
    %c0_i32_0 = arith.constant 0 : i32
    return %arg0, %c0_i32 : i32, i32
  }
  func.func @transform_1(%arg0: i32) -> (i32, i32) {
    %c0_i32 = arith.constant 0 : i32
    %c0_i32_0 = arith.constant 0 : i32
    return %arg0, %c0_i32 : i32, i32
  }
  func.func @transform_2(%arg0: i32) -> (i32, i32) {
    %c0_i32 = arith.constant 0 : i32
    %c0_i32_0 = arith.constant 0 : i32
    return %arg0, %c0_i32 : i32, i32
  }
  func.func @transform_3(%arg0: i32) -> (i32, i32) {
    %c0_i32 = arith.constant 0 : i32
    %c0_i32_0 = arith.constant 0 : i32
    return %arg0, %c0_i32 : i32, i32
  }
}

</mosaic_0001>

<llo_original>
// kernel: tpu_custom_call.1
$region0: #{tpu_custom_call.1}
  #allocation0 [shape = 'u32[]', space=smem, size = 0x4, offset = 0x4, fixed_abs, tag = 'smem constant byte address 0x4 - core index']
  #allocation1 [shape = 'u32[72,128]{1,0:T(1,128)}', space=vmem, size = 0x9000, scoped, tag = 'internal scratch']
  %s0 = inlined_call_operand.vmem [shape: f32[8,1], index: 0, kind: input, shape index: {}]
  %s1 = inlined_call_operand.vmem [shape: f32[8,1], index: 1, kind: input, shape index: {}]
  %s2 = inlined_call_operand.vmem [shape: f32[8,256], index: 2, kind: input, shape index: {}]
  %s3 = inlined_call_operand.hbm [shape: f32[8,256], index: 3, kind: output, shape index: {}]
  %s4 = sld [smem:[#allocation0]]
  $region22: #{tpu_custom_call.1} parent=0
    _
  %s6 = ssub.s32 1, %s4
  %s7 = scalar_select 0, %s6, %s4
  $region1: #{tpu_custom_call.1} parent=0
    #allocation2 [shape = 'u8[8192]{0}', space=vmem, size = 0x2000, scoped, tag = 'output window, operand 0, single buffered']
    #allocation3 [shape = 's32[1]{0}', space=sflag, size = 0x4, scoped, tag = 'scoped memory for tpu_custom_call.1']
    %8 = vsyncpa [#allocation3], 0
    // Predicated region
    $region2: #{tpu_custom_call.1} parent=1 // pred_check
      _
    $region3: #{tpu_custom_call.1} parent=1 // pred_check_branch
      %10 = sbr.rel (0) target = $region5
    $region4: #{tpu_custom_call.1} parent=1 // pred_region
      _
    $region5: #{tpu_custom_call.1} parent=1 // pred_fallthru
      _
    // Predicated region
    $region6: #{tpu_custom_call.1} parent=1 // pred_check
      _
    $region7: #{tpu_custom_call.1} parent=1 // pred_check_branch
      %12 = sbr.rel (0) target = $region9
    $region8: #{tpu_custom_call.1} parent=1 // pred_region
      _
    $region9: #{tpu_custom_call.1} parent=1 // pred_fallthru
      _
    // Predicated region
    $region10: #{tpu_custom_call.1} parent=1 // pred_check
      _
    $region11: #{tpu_custom_call.1} parent=1 // pred_check_branch
      %14 = sbr.rel (0) target = $region13
    $region12: #{tpu_custom_call.1} parent=1 // pred_region
      _
    $region13: #{tpu_custom_call.1} parent=1 // pred_fallthru
      _
    %v15 = vld [vmem:[%s2] sm:$0xff]
    %v16 = vld [vmem:[%s2 + $0x8] sm:$0xff]
    %v17 = vadd.f32 %v15, %v16
    %18 = vadd.xlane.f32.xlu0 %v17
    %v19 = vpop.xlane.xlu0 %18
    %v20 = vmul.f32 %v19, 0.00390625
    %v21 = vmul.f32 %v15, %v15
    %v22 = vmul.f32 %v16, %v16
    %v23 = vadd.f32 %v21, %v22
    %24 = vadd.xlane.f32.xlu0 %v23
    %v25 = vpop.xlane.xlu0 %24
    %v26 = vmul.f32 %v25, 0.00390625
    %v27 = vmul.f32 %v20, %v20
    %v28 = vsub.f32 %v26, %v27
    %v29 = vmax.f32 %v28, 0.0
    %v30 = vld [vmem:[%s0] sm:$0xff]
    %v31 = vadd.f32 %v30, 1.0
    %v32 = vadd.f32 %v29, 1e-05
    %v33 = vrsqrt.pop %v32
    %v34 = vmul.f32 %v33, %v32
    %v35 = vmul.f32 %v34, %v33
    %v36 = vmul.f32 0.5, %v35
    %v37 = vsub.f32 1.5, %v36
    %v38 = vmul.f32 %v33, %v37
    %vm39 = vweird.f32 %v32
    %vm40 = vweird.f32 %v33
    %vm41 = vmor %vm39, %vm40
    %v42 = vsel %vm41, %v33, %v38
    %v43 = vmul.f32 %v31, %v42
    %v44 = vld [vmem:[%s1] sm:$0xff]
    %v45 = vmul.f32 %v43, %v20
    %v46 = vsub.f32 %v44, %v45
    %48 = vset.pattern.permute.xlu0 0
    %49 = vperm.xlu0 %48, %v43
    %v50 = vpop.permute.xlu0 %49
    %v52 = vmul.f32 %v15, %v50
    %v53 = vmul.f32 %v16, %v50
    %55 = vset.pattern.permute.xlu0 0
    %56 = vperm.xlu0 %55, %v46
    %v57 = vpop.permute.xlu0 %56
    %v59 = vadd.f32 %v52, %v57
    %v60 = vadd.f32 %v53, %v57
    %61 = vst [vmem:[#allocation2] sm:$0xff] %v59
    %62 = vst [vmem:[#allocation2 + $0x8] sm:$0xff] %v60
    // Predicated region
    $region14: #{tpu_custom_call.1} parent=1 // pred_check
      _
    $region15: #{tpu_custom_call.1} parent=1 // pred_check_branch
      %64 = sbr.rel (0) target = $region17
    $region16: #{tpu_custom_call.1} parent=1 // pred_region
      %66 = vsyncadd [#allocation3], 0
      %s68 = sshll.u32 [#allocation2], 4
      %s69 = int_to_ptr.vmem [resolvable:$true] %s68
      %s70 = sshll.u32 %s3, 4
      %s71 = int_to_ptr.hbm [resolvable:$true] %s70
      %73 = dma.vmem_to_hbm [thread:$0]  %s69, 256, %s71, [#allocation3]
    $region17: #{tpu_custom_call.1} parent=1 // pred_fallthru
      _
    // Predicated region
    $region18: #{tpu_custom_call.1} parent=1 // pred_check
      _
    $region19: #{tpu_custom_call.1} parent=1 // pred_check_branch
      %75 = sbr.rel (0) target = $region21
    $region20: #{tpu_custom_call.1} parent=1 // pred_region
      %77 = dma.done [#allocation3], 256
    $region21: #{tpu_custom_call.1} parent=1 // pred_fallthru
      _
    %78 = vsyncpa [#allocation3], 1

</llo_original>
